<compile_context>
chip_gen: v7x
topology: tpu7x:2x2x1
jax: 0.10.0
libtpu: 0.0.40
codegen_flags: <defaults>
</compile_context>

<pallas_src>
import math
import functools

import jax
import jax.numpy as jnp
from jax.experimental import pallas as pl
from jax.experimental.pallas import tpu as pltpu


def _round_up(x, m):
    return (x + m - 1) // m * m


def _mha_kernel(*refs, scale, has_mask, has_qmask, return_attn,
                tk_valid, tk_pad, matmul_dtype):
    i = 0
    q_ref = refs[i]; i += 1            # (bb, tq, D)
    k_ref = refs[i]; i += 1            # (bb, Tk_p, D)
    v_ref = refs[i]; i += 1            # (bb, Tk_p, D_v)
    mask_ref = None
    qmask_ref = None
    if has_mask:
        mask_ref = refs[i]; i += 1     # int8, broadcastable to (bb, tq, Tk_p)
    if has_qmask:
        qmask_ref = refs[i]; i += 1    # broadcastable to (bb, tq, Tk_p)
    out_ref = refs[i]; i += 1          # (bb, tq, D_v)
    attn_ref = refs[i] if return_attn else None

    # Fold 1/sqrt(D) into the small (tq, D) q tile rather than the big scores.
    q = q_ref[...] * scale
    k = k_ref[...]
    if matmul_dtype is not None:
        q = q.astype(matmul_dtype)
        k = k.astype(matmul_dtype)

    # Batched contraction on the last dims — no explicit K transpose (no XLU
    # copy); MXU matmul with f32 accumulation.
    scores = jnp.einsum("bqd,bkd->bqk", q, k,
                        preferred_element_type=jnp.float32)

    if has_mask:
        # Low-rank masks broadcast for free on the VPU.
        scores = jnp.where(mask_ref[...] != 0, jnp.float32(-10000.0), scores)

    if tk_valid is not None:
        # Padded key columns -> -inf so exp() is exactly 0 and the softmax
        # denominator only sees real keys (exact match to unpadded reference).
        col = jax.lax.broadcasted_iota(jnp.int32, (1, 1, tk_pad), 2)
        scores = jnp.where(col >= tk_valid, -jnp.inf, scores)

    # Numerically-stable softmax over keys; EUP approx reciprocal (free slot).
    m = jnp.max(scores, axis=-1, keepdims=True)
    e = jnp.exp(scores - m)
    denom = jnp.sum(e, axis=-1, keepdims=True)
    attn = e * pl.reciprocal(denom, approx=True)

    if has_qmask:
        attn = attn * qmask_ref[...].astype(jnp.float32)

    if return_attn:
        attn_ref[...] = attn.astype(attn_ref.dtype)

    v = v_ref[...]
    pv_dtype = matmul_dtype if matmul_dtype is not None else v.dtype
    out = jnp.einsum("bqk,bkd->bqd", attn.astype(pv_dtype), v.astype(pv_dtype),
                     preferred_element_type=jnp.float32)
    out_ref[...] = out.astype(out_ref.dtype)


def _vmem_block_bytes(*, bb, tq, tk, d, dv, q_isz, kv_isz, mask_shape,
                      qmask_shape, qmask_isz, attn_isz, out_isz):
    """Per-grid-step VMEM estimate: 2 buffers per pipelined block + live f32 slabs."""
    total = 2 * bb * tq * d * q_isz                 # q block
    total += 2 * bb * tk * d * kv_isz               # k block (2 bufs even though reused)
    total += 2 * bb * tk * dv * kv_isz              # v block
    if mask_shape is not None:
        mb, mq, mk = mask_shape
        total += 2 * min(bb, mb) * (tq if mq > 1 else 1) * mk * 1       # int8
    if qmask_shape is not None:
        qb, qq, qk = qmask_shape
        total += 2 * min(bb, qb) * (tq if qq > 1 else 1) * qk * qmask_isz
    total += 2 * bb * tq * dv * out_isz             # result block
    if attn_isz:
        total += 2 * bb * tq * tk * attn_isz        # attn block
    total += 3 * bb * tq * tk * 4                   # live f32 scores / exp / attn
    return total


def _vmem_budget_and_limit():
    # Per-generation budget: ~38 MiB blocks / 48 MiB limit on v7x (64 MiB/TC),
    # ~76 MiB / 96 MiB on v5e & v6e (128 MiB).  Conservative fallback = v7x.
    try:
        cap = int(pltpu.get_tpu_info().vmem_capacity_bytes)
    except Exception:
        cap = 64 * 1024 * 1024
    return int(cap * 0.6), int(cap * 0.75)


def _choose_tiles(B, T_q, est, budget):
    # Largest q tile that fits the budget (big tiles amortize ~0.35us/step).
    tq = None
    for cand in (1024, 512, 256, 128, 64, 32, 16, 8):
        t = T_q if T_q <= cand else cand
        if est(1, t) <= budget:
            tq = t
            break
    if tq is None:
        tq = min(T_q, 8)
    # Group batch elements per grid step (fills sublanes/vregs, divides the
    # per-step overhead for tiny problems) while the budget allows.
    bb = 1
    for cand in (64, 32, 16, 8, 4, 2):
        b = min(B, cand)
        if b > 1 and est(b, tq) <= budget:
            bb = b
            break
    return bb, tq


def multihead_attention(key, value, query, mask=None, query_mask=None, *,
                        return_attn=True, attn_dtype=jnp.float32,
                        matmul_dtype=None, query_mask_dtype=None):
    """Pallas equivalent of MultiheadAttention.forward.

    key:   (B, T_k, D);  value: (B, T_k, D_v);  query: (B, T_q, D)
    mask / query_mask: any shape broadcastable to (B, T_q, T_k); they are
      streamed at their natural rank (no full-rank materialization).
    return_attn=False skips the (B,T_q,T_k) attn writeback (returns (result, None)).
    attn_dtype: dtype of the stored attn (f32 default; bf16 halves its HBM stream).
    matmul_dtype: optional operand dtype for the MXU matmuls (bf16 on v6e/v7x).
    query_mask_dtype: optional streaming dtype for query_mask (bf16 for binary masks).
    Returns (result, attn).
    """
    key = jnp.asarray(key)
    value = jnp.asarray(value)
    query = jnp.asarray(query)
    B, T_k, D = key.shape
    _, _, D_v = value.shape
    _, T_q, _ = query.shape

    scale = 1.0 / math.sqrt(D)   # num_hidden_k == D

    # ---- lane-density padding of the key axis (attn's last dim) -------------
    Tk_p = T_k
    if T_k % 128 != 0:
        cand = _round_up(T_k, 128)
        if 2 * cand <= 3 * T_k:          # pad only when overhead <= 50%
            Tk_p = cand
    tk_valid = T_k if Tk_p != T_k else None

    # ---- normalize masks to rank-3 broadcastable shapes (kept low-rank) -----
    def _norm(m, name):
        m = jnp.asarray(m)
        if m.ndim > 3:
            raise ValueError(f"{name} rank must be <= 3, got {m.ndim}")
        m = m.reshape((1,) * (3 - m.ndim) + m.shape)
        mb, mq, mk = m.shape
        if mb not in (1, B) or mq not in (1, T_q) or mk not in (1, T_k):
            raise ValueError(f"{name} shape {m.shape} is not broadcastable "
                             f"to {(B, T_q, T_k)}")
        return m

    has_mask = mask is not None
    has_qmask = query_mask is not None
    mask_i8 = _norm((jnp.asarray(mask) != 0).astype(jnp.int8), "mask") if has_mask else None
    qmask_n = _norm(query_mask, "query_mask") if has_qmask else None
    if has_qmask and query_mask_dtype is not None:
        qmask_n = qmask_n.astype(query_mask_dtype)

    # ---- per-generation VMEM budget -> tile sizes ----------------------------
    budget, vmem_limit = _vmem_budget_and_limit()
    attn_isz = jnp.dtype(attn_dtype).itemsize if return_attn else 0
    kv_isz = max(key.dtype.itemsize, value.dtype.itemsize)
    est_fn = functools.partial(
        _vmem_block_bytes,
        tk=Tk_p, d=D, dv=D_v,
        q_isz=query.dtype.itemsize, kv_isz=kv_isz,
        mask_shape=(mask_i8.shape if has_mask else None),
        qmask_shape=(qmask_n.shape if has_qmask else None),
        qmask_isz=(qmask_n.dtype.itemsize if has_qmask else 0),
        attn_isz=attn_isz, out_isz=query.dtype.itemsize)
    bb, tq = _choose_tiles(B, T_q, lambda b, t: est_fn(bb=b, tq=t), budget)

    # T_q only needs (8-sublane) padding when we actually tile it.
    Tq_p = T_q if tq >= T_q else _round_up(T_q, 8)

    # ---- pad inputs (zeros; padded key columns are masked to -inf in-kernel) -
    def _pad3(x, t1, t2):
        p1 = t1 - x.shape[1]
        p2 = t2 - x.shape[2]
        if p1 or p2:
            x = jnp.pad(x, ((0, 0), (0, p1), (0, p2)))
        return x

    query_p = _pad3(query, Tq_p, D)
    key_p = _pad3(key, Tk_p, D)
    value_p = _pad3(value, Tk_p, D_v)

    inputs = [query_p, key_p, value_p]
    # qi is the innermost grid axis -> the K/V blocks (index constant along qi)
    # are fetched once per batch group and reused across all q tiles.
    in_specs = [
        pl.BlockSpec((bb, tq, D), lambda bi, qi: (bi, qi, 0)),       # query tile
        pl.BlockSpec((bb, Tk_p, D), lambda bi, qi: (bi, 0, 0)),      # key (reused)
        pl.BlockSpec((bb, Tk_p, D_v), lambda bi, qi: (bi, 0, 0)),    # value (reused)
    ]

    def _bcast_spec(shape):
        mb, mq, mk = shape
        b_full, q_full = mb > 1, mq > 1
        blk = (bb if b_full else 1, tq if q_full else 1, mk)

        def idx(bi, qi, _b=b_full, _q=q_full):
            return (bi if _b else 0, qi if _q else 0, 0)
        return pl.BlockSpec(blk, idx)

    if has_mask:
        mb, mq, mk = mask_i8.shape
        mask_i8 = _pad3(mask_i8, Tq_p if mq > 1 else 1, Tk_p if mk > 1 else 1)
        inputs.append(mask_i8)
        in_specs.append(_bcast_spec(mask_i8.shape))
    if has_qmask:
        qb, qq, qk = qmask_n.shape
        qmask_n = _pad3(qmask_n, Tq_p if qq > 1 else 1, Tk_p if qk > 1 else 1)
        inputs.append(qmask_n)
        in_specs.append(_bcast_spec(qmask_n.shape))

    out_shape = [jax.ShapeDtypeStruct((B, Tq_p, D_v), query.dtype)]
    out_specs = [pl.BlockSpec((bb, tq, D_v), lambda bi, qi: (bi, qi, 0))]
    if return_attn:
        out_shape.append(jax.ShapeDtypeStruct((B, Tq_p, Tk_p), attn_dtype))
        out_specs.append(pl.BlockSpec((bb, tq, Tk_p), lambda bi, qi: (bi, qi, 0)))

    kernel = functools.partial(
        _mha_kernel, scale=scale, has_mask=has_mask, has_qmask=has_qmask,
        return_attn=return_attn, tk_valid=tk_valid, tk_pad=Tk_p,
        matmul_dtype=matmul_dtype)

    grid = (pl.cdiv(B, bb), pl.cdiv(Tq_p, tq))

    outs = pl.pallas_call(
        kernel,
        grid_spec=pltpu.PrefetchScalarGridSpec(
            num_scalar_prefetch=0,
            grid=grid,
            in_specs=in_specs,
            out_specs=out_specs,
        ),
        out_shape=tuple(out_shape),
        compiler_params=pltpu.CompilerParams(
            dimension_semantics=("parallel", "parallel"),
            vmem_limit_bytes=vmem_limit,
        ),
    )(*inputs)

    if not isinstance(outs, (tuple, list)):
        outs = (outs,)
    result = outs[0]
    if Tq_p != T_q:
        result = result[:, :T_q, :]
    if return_attn:
        attn = outs[1]
        if Tq_p != T_q or Tk_p != T_k:
            attn = attn[:, :T_q, :T_k]
        return result, attn
    return result, None


def _reference(key, value, query, mask=None, query_mask=None):
    d = key.shape[-1]
    prec = jax.lax.Precision.HIGHEST
    attn = jnp.einsum("bqd,bkd->bqk", query, key, precision=prec) / math.sqrt(d)
    if mask is not None:
        attn = jnp.where(mask, -10000.0, attn)
    attn = jax.nn.softmax(attn, axis=-1)
    if query_mask is not None:
        attn = attn * query_mask
    result = jnp.einsum("bqk,bkd->bqd", attn, value, precision=prec)
    return result, attn


if __name__ == "__main__":
    TOL = dict(atol=2e-3, rtol=2e-3)

    def check(B, T_q, T_k, D, D_v, mask_shape=None, qmask_shape=None,
              qmask_stream_dtype=None, seed=0):
        rng = jax.random.PRNGKey(seed)
        kq, kk, kv, km, kqm = jax.random.split(rng, 5)
        query = jax.random.normal(kq, (B, T_q, D), jnp.float32)
        key = jax.random.normal(kk, (B, T_k, D), jnp.float32)
        value = jax.random.normal(kv, (B, T_k, D_v), jnp.float32)
        mask = jax.random.bernoulli(km, 0.25, mask_shape) if mask_shape else None
        qmask = (jax.random.bernoulli(kqm, 0.75, qmask_shape).astype(jnp.float32)
                 if qmask_shape else None)

        res, attn = multihead_attention(key, value, query, mask, qmask,
                                        query_mask_dtype=qmask_stream_dtype)
        jax.block_until_ready((res, attn))
        ref_res, ref_attn = _reference(key, value, query, mask, qmask)
        assert res.shape == ref_res.shape and attn.shape == ref_attn.shape
        assert jnp.allclose(res, ref_res, **TOL), ("result", B, T_q, T_k)
        assert jnp.allclose(attn, ref_attn, **TOL), ("attn", B, T_q, T_k)

        # result-only path: the attn writeback is skipped entirely.
        res2, attn2 = multihead_attention(key, value, query, mask, qmask,
                                          return_attn=False)
        jax.block_until_ready(res2)
        assert attn2 is None
        assert jnp.allclose(res2, ref_res, **TOL), ("result-only", B, T_q, T_k)

    # Small shapes: batch=2, T_q=8, T_k=8, hidden=32.
    B, T_q, T_k, D, D_v = 2, 8, 8, 32, 32
    # Full-rank masks (original call pattern).
    check(B, T_q, T_k, D, D_v, mask_shape=(B, T_q, T_k), qmask_shape=(B, T_q, T_k))
    # Natural low-rank masks: (B,1,T_k) key-padding mask + (B,T_q,1) query mask,
    # query_mask streamed as bf16 (binary mask -> exact).
    check(B, T_q, T_k, D, D_v, mask_shape=(B, 1, T_k), qmask_shape=(B, T_q, 1),
          qmask_stream_dtype=jnp.bfloat16)
    # Mask only / no masks.
    check(B, T_q, T_k, D, D_v, mask_shape=(B, 1, T_k))
    check(B, T_q, T_k, D, D_v)
    # Non-x128 T_k exercising the lane-density padding + in-kernel -inf column mask.
    check(2, 16, 200, 32, 32, mask_shape=(2, 1, 200), qmask_shape=(2, 16, 1))

    print("KERNEL_OK")
</pallas_src>

<mosaic_0001>
module attributes {stable_mosaic.version = 11 : i64} {
  func.func @_mha_kernel(%arg0: i32, %arg1: i32, %arg2: memref<2x8x32xf32, #tpu.memory_space<vmem>>, %arg3: memref<2x8x32xf32, #tpu.memory_space<vmem>>, %arg4: memref<2x8x32xf32, #tpu.memory_space<vmem>>, %arg5: memref<2x8x8xi8, #tpu.memory_space<vmem>>, %arg6: memref<2x8x8xf32, #tpu.memory_space<vmem>>, %arg7: memref<2x8x32xf32, #tpu.memory_space<vmem>>, %arg8: memref<2x8x8xf32, #tpu.memory_space<vmem>>) attributes {dimension_semantics = [#tpu.dimension_semantics<parallel>, #tpu.dimension_semantics<parallel>], iteration_bounds = array<i64: 1, 1>, scalar_prefetch = 0 : i64, scratch_operands = 0 : i64, tpu.core_type = #tpu.core_type<tc>, window_params = [{transform_indices = @transform_0, window_bounds = array<i64: 2, 8, 32>}, {transform_indices = @transform_1, window_bounds = array<i64: 2, 8, 32>}, {transform_indices = @transform_2, window_bounds = array<i64: 2, 8, 32>}, {transform_indices = @transform_3, window_bounds = array<i64: 2, 8, 8>}, {transform_indices = @transform_4, window_bounds = array<i64: 2, 8, 8>}, {transform_indices = @transform_5, window_bounds = array<i64: 2, 8, 32>}, {transform_indices = @transform_6, window_bounds = array<i64: 2, 8, 8>}]} {
    %c0 = arith.constant 0 : index
    %c0_0 = arith.constant 0 : index
    %c0_1 = arith.constant 0 : index
    %0 = vector.load %arg2[%c0, %c0_0, %c0_1] : memref<2x8x32xf32, #tpu.memory_space<vmem>>, vector<2x8x32xf32>
    %cst = arith.constant 0.176776692 : f32
    %1 = vector.broadcast %cst : f32 to vector<2x8x32xf32>
    %2 = arith.mulf %0, %1 : vector<2x8x32xf32>
    %c0_2 = arith.constant 0 : index
    %c0_3 = arith.constant 0 : index
    %c0_4 = arith.constant 0 : index
    %3 = vector.load %arg3[%c0_2, %c0_3, %c0_4] : memref<2x8x32xf32, #tpu.memory_space<vmem>>, vector<2x8x32xf32>
    "tpu.trace_start"() <{level = 10 : i32, message = "bqd,bkd->bqk"}> : () -> ()
    %cst_5 = arith.constant dense<0.000000e+00> : vector<2x8x8xf32>
    %4 = tpu.matmul %2, %3, %cst_5 {dimension_numbers = #tpu.dot_dimension_numbers<[2], [2], [1], [1], [0, 0, 0, 1, 1, 1], [0], [0]>} : vector<2x8x32xf32>, vector<2x8x32xf32>, vector<2x8x8xf32> -> vector<2x8x8xf32>
    "tpu.trace_stop"() : () -> ()
    %c0_6 = arith.constant 0 : index
    %c0_7 = arith.constant 0 : index
    %c0_8 = arith.constant 0 : index
    %5 = vector.load %arg5[%c0_6, %c0_7, %c0_8] : memref<2x8x8xi8, #tpu.memory_space<vmem>>, vector<2x8x8xi8>
    %c0_i8 = arith.constant 0 : i8
    %6 = vector.broadcast %c0_i8 : i8 to vector<2x8x8xi8>
    %7 = arith.cmpi ne, %5, %6 : vector<2x8x8xi8>
    %cst_9 = arith.constant -1.000000e+04 : f32
    %8 = vector.broadcast %cst_9 : f32 to vector<2x8x8xf32>
    %9 = arith.select %7, %8, %4 : vector<2x8x8xi1>, vector<2x8x8xf32>
    %cst_10 = arith.constant dense<0xFF800000> : vector<2x8xf32>
    %10 = vector.multi_reduction <maximumf>, %9, %cst_10 [2] : vector<2x8x8xf32> to vector<2x8xf32>
    %11 = vector.shape_cast %10 : vector<2x8xf32> to vector<2x8x1xf32>
    %12 = vector.broadcast %11 : vector<2x8x1xf32> to vector<2x8x8xf32>
    %13 = arith.subf %9, %12 : vector<2x8x8xf32>
    %14 = math.exp %13 : vector<2x8x8xf32>
    %cst_11 = arith.constant dense<0.000000e+00> : vector<2x8xf32>
    %15 = vector.multi_reduction <add>, %14, %cst_11 [2] : vector<2x8x8xf32> to vector<2x8xf32>
    %16 = vector.shape_cast %15 : vector<2x8xf32> to vector<2x8x1xf32>
    %17 = tpu.reciprocal %16 {approx = true} : vector<2x8x1xf32> -> vector<2x8x1xf32>
    %18 = vector.broadcast %17 : vector<2x8x1xf32> to vector<2x8x8xf32>
    %19 = arith.mulf %14, %18 : vector<2x8x8xf32>
    %c0_12 = arith.constant 0 : index
    %c0_13 = arith.constant 0 : index
    %c0_14 = arith.constant 0 : index
    %20 = vector.load %arg6[%c0_12, %c0_13, %c0_14] : memref<2x8x8xf32, #tpu.memory_space<vmem>>, vector<2x8x8xf32>
    %21 = arith.mulf %19, %20 : vector<2x8x8xf32>
    %c0_15 = arith.constant 0 : index
    %c0_16 = arith.constant 0 : index
    %c0_17 = arith.constant 0 : index
    %22 = vector.load %arg8[%c0_15, %c0_16, %c0_17] : memref<2x8x8xf32, #tpu.memory_space<vmem>>, vector<2x8x8xf32>
    tpu.vector_store %arg8[%c0_15, %c0_16, %c0_17], %21 {strides = array<i32>} : memref<2x8x8xf32, #tpu.memory_space<vmem>>, vector<2x8x8xf32>,
    %c0_18 = arith.constant 0 : index
    %c0_19 = arith.constant 0 : index
    %c0_20 = arith.constant 0 : index
    %23 = vector.load %arg4[%c0_18, %c0_19, %c0_20] : memref<2x8x32xf32, #tpu.memory_space<vmem>>, vector<2x8x32xf32>
    "tpu.trace_start"() <{level = 10 : i32, message = "bqk,bkd->bqd"}> : () -> ()
    %cst_21 = arith.constant dense<0.000000e+00> : vector<2x8x32xf32>
    %24 = tpu.matmul %21, %23, %cst_21 {dimension_numbers = #tpu.dot_dimension_numbers<[2], [1], [1], [2], [0, 0, 0, 1, 1, 2], [0], [0]>} : vector<2x8x8xf32>, vector<2x8x32xf32>, vector<2x8x32xf32> -> vector<2x8x32xf32>
    "tpu.trace_stop"() : () -> ()
    %c0_22 = arith.constant 0 : index
    %c0_23 = arith.constant 0 : index
    %c0_24 = arith.constant 0 : index
    %25 = vector.load %arg7[%c0_22, %c0_23, %c0_24] : memref<2x8x32xf32, #tpu.memory_space<vmem>>, vector<2x8x32xf32>
    tpu.vector_store %arg7[%c0_22, %c0_23, %c0_24], %24 {strides = array<i32>} : memref<2x8x32xf32, #tpu.memory_space<vmem>>, vector<2x8x32xf32>,
    return
  }
  func.func @transform_0(%arg0: i32, %arg1: i32) -> (i32, i32, i32) {
    %c0_i32 = arith.constant 0 : i32
    %c0_i32_0 = arith.constant 0 : i32
    return %arg0, %arg1, %c0_i32 : i32, i32, i32
  }
  func.func @transform_1(%arg0: i32, %arg1: i32) -> (i32, i32, i32) {
    %c0_i32 = arith.constant 0 : i32
    %c0_i32_0 = arith.constant 0 : i32
    %c0_i32_1 = arith.constant 0 : i32
    return %arg0, %c0_i32, %c0_i32_0 : i32, i32, i32
  }
  func.func @transform_2(%arg0: i32, %arg1: i32) -> (i32, i32, i32) {
    %c0_i32 = arith.constant 0 : i32
    %c0_i32_0 = arith.constant 0 : i32
    %c0_i32_1 = arith.constant 0 : i32
    return %arg0, %c0_i32, %c0_i32_0 : i32, i32, i32
  }
  func.func @transform_3(%arg0: i32, %arg1: i32) -> (i32, i32, i32) {
    %c0_i32 = arith.constant 0 : i32
    %c0_i32_0 = arith.constant 0 : i32
    return %arg0, %arg1, %c0_i32 : i32, i32, i32
  }
  func.func @transform_4(%arg0: i32, %arg1: i32) -> (i32, i32, i32) {
    %c0_i32 = arith.constant 0 : i32
    %c0_i32_0 = arith.constant 0 : i32
    return %arg0, %arg1, %c0_i32 : i32, i32, i32
  }
  func.func @transform_5(%arg0: i32, %arg1: i32) -> (i32, i32, i32) {
    %c0_i32 = arith.constant 0 : i32
    %c0_i32_0 = arith.constant 0 : i32
    return %arg0, %arg1, %c0_i32 : i32, i32, i32
  }
  func.func @transform_6(%arg0: i32, %arg1: i32) -> (i32, i32, i32) {
    %c0_i32 = arith.constant 0 : i32
    %c0_i32_0 = arith.constant 0 : i32
    return %arg0, %arg1, %c0_i32 : i32, i32, i32
  }
}

</mosaic_0001>

<llo_original>
// kernel: tpu_custom_call.1
$region0: #{tpu_custom_call.1}
  #allocation0 [shape = 'u32[]', space=smem, size = 0x4, offset = 0x4, fixed_abs, tag = 'smem constant byte address 0x4 - core index']
  #allocation1 [shape = 'u32[144,128]{1,0:T(1,128)}', space=vmem, size = 0x12000, scoped, tag = 'internal scratch']
  %s0 = inlined_call_operand.hbm [shape: f32[2,8,32], index: 0, kind: input, shape index: {}]
  %s1 = inlined_call_operand.hbm [shape: f32[2,8,32], index: 1, kind: input, shape index: {}]
  %s2 = inlined_call_operand.hbm [shape: f32[2,8,32], index: 2, kind: input, shape index: {}]
  %s3 = inlined_call_operand.vmem [shape: s8[2,8,8], index: 3, kind: input, shape index: {}]
  %s4 = inlined_call_operand.hbm [shape: f32[2,8,8], index: 4, kind: input, shape index: {}]
  %s5 = inlined_call_operand.hbm [shape: f32[2,8,32], index: 5, kind: output, shape index: {0}]
  %s6 = inlined_call_operand.hbm [shape: f32[2,8,8], index: 6, kind: output, shape index: {1}]
  %7 = xla_tuple %s5, %s6
  %s8 = sld [smem:[#allocation0]]
  $region54: #{tpu_custom_call.1} parent=0
    _
  %s10 = ssub.s32 1, %s8
  %s11 = scalar_select 0, %s10, %s8
  $region1: #{tpu_custom_call.1} parent=0
    #allocation2 [shape = 'u8[8192]{0}', space=vmem, size = 0x2000, scoped, tag = 'input window, operand 0, single buffered']
    #allocation3 [shape = 's32[1]{0}', space=sflag, size = 0x4, scoped, tag = 'scoped memory for tpu_custom_call.1']
    #allocation4 [shape = 's32[1]{0}', space=sflag, size = 0x4, scoped, tag = 'scoped memory for tpu_custom_call.1']
    #allocation5 [shape = 'u8[8192]{0}', space=vmem, size = 0x2000, scoped, tag = 'input window, operand 1, single buffered']
    #allocation6 [shape = 's32[1]{0}', space=sflag, size = 0x4, scoped, tag = 'scoped memory for tpu_custom_call.1']
    #allocation7 [shape = 'u8[8192]{0}', space=vmem, size = 0x2000, scoped, tag = 'input window, operand 2, single buffered']
    #allocation8 [shape = 'u8[8192]{0}', space=vmem, size = 0x2000, scoped, tag = 'input window, operand 4, single buffered']
    #allocation9 [shape = 's32[1]{0}', space=sflag, size = 0x4, scoped, tag = 'scoped memory for tpu_custom_call.1']
    #allocation10 [shape = 'u8[8192]{0}', space=vmem, size = 0x2000, scoped, tag = 'output window, operand 0, single buffered']
    #allocation11 [shape = 'u8[8192]{0}', space=vmem, size = 0x2000, scoped, tag = 'output window, operand 1, single buffered']
    #allocation12 [shape = 's32[1]{0}', space=sflag, size = 0x4, scoped, tag = 'scoped memory for tpu_custom_call.1']
    %12 = vsyncpa [#allocation3], 0
    %13 = vsyncpa [#allocation6], 0
    %14 = vsyncpa [#allocation9], 0
    %15 = vsyncpa [#allocation4], 0
    %16 = vsyncpa [#allocation12], 0
    // Predicated region
    $region2: #{tpu_custom_call.1} parent=1 // pred_check
      _
    $region3: #{tpu_custom_call.1} parent=1 // pred_check_branch
      %18 = sbr.rel (0) target = $region5
    $region4: #{tpu_custom_call.1} parent=1 // pred_region
      %s20 = ssub.s32 256, 256
      %21 = vsyncadd [#allocation3], %s20
      %s22 = sshll.u32 [#allocation2], 4
      %s23 = int_to_ptr.vmem [resolvable:$true] %s22
      %28 = dma.hbm_to_vmem [thread:$0]  %s0, 256, %s23, [#allocation3], 128, 128, 8
    $region5: #{tpu_custom_call.1} parent=1 // pred_fallthru
      _
    // Predicated region
    $region6: #{tpu_custom_call.1} parent=1 // pred_check
      _
    $region7: #{tpu_custom_call.1} parent=1 // pred_check_branch
      %30 = sbr.rel (0) target = $region9
    $region8: #{tpu_custom_call.1} parent=1 // pred_region
      %s32 = ssub.s32 256, 256
      %33 = vsyncadd [#allocation6], %s32
      %s34 = sshll.u32 [#allocation5], 4
      %s35 = int_to_ptr.vmem [resolvable:$true] %s34
      %40 = dma.hbm_to_vmem [thread:$0]  %s1, 256, %s35, [#allocation6], 128, 128, 8
    $region9: #{tpu_custom_call.1} parent=1 // pred_fallthru
      _
    // Predicated region
    $region10: #{tpu_custom_call.1} parent=1 // pred_check
      _
    $region11: #{tpu_custom_call.1} parent=1 // pred_check_branch
      %42 = sbr.rel (0) target = $region13
    $region12: #{tpu_custom_call.1} parent=1 // pred_region
      %s44 = ssub.s32 256, 256
      %45 = vsyncadd [#allocation6], %s44
      %s46 = sshll.u32 [#allocation7], 4
      %s47 = int_to_ptr.vmem [resolvable:$true] %s46
      %52 = dma.hbm_to_vmem [thread:$0]  %s2, 256, %s47, [#allocation6], 128, 128, 8
    $region13: #{tpu_custom_call.1} parent=1 // pred_fallthru
      _
    // Predicated region
    $region14: #{tpu_custom_call.1} parent=1 // pred_check
      _
    $region15: #{tpu_custom_call.1} parent=1 // pred_check_branch
      %54 = sbr.rel (0) target = $region17
    $region16: #{tpu_custom_call.1} parent=1 // pred_region
      _
    $region17: #{tpu_custom_call.1} parent=1 // pred_fallthru
      _
    // Predicated region
    $region18: #{tpu_custom_call.1} parent=1 // pred_check
      _
    $region19: #{tpu_custom_call.1} parent=1 // pred_check_branch
      %56 = sbr.rel (0) target = $region21
    $region20: #{tpu_custom_call.1} parent=1 // pred_region
      %s58 = ssub.s32 256, 256
      %59 = vsyncadd [#allocation9], %s58
      %s60 = sshll.u32 [#allocation8], 4
      %s61 = int_to_ptr.vmem [resolvable:$true] %s60
      %66 = dma.hbm_to_vmem [thread:$0]  %s4, 256, %s61, [#allocation9], 128, 128, 8
    $region21: #{tpu_custom_call.1} parent=1 // pred_fallthru
      _
    // Predicated region
    $region22: #{tpu_custom_call.1} parent=1 // pred_check
      _
    $region23: #{tpu_custom_call.1} parent=1 // pred_check_branch
      %68 = sbr.rel (0) target = $region25
    $region24: #{tpu_custom_call.1} parent=1 // pred_region
      %69 = dma.done [#allocation3], 256
    $region25: #{tpu_custom_call.1} parent=1 // pred_fallthru
      _
    // Predicated region
    $region26: #{tpu_custom_call.1} parent=1 // pred_check
      _
    $region27: #{tpu_custom_call.1} parent=1 // pred_check_branch
      %71 = sbr.rel (0) target = $region29
    $region28: #{tpu_custom_call.1} parent=1 // pred_region
      %72 = dma.done [#allocation6], 256
    $region29: #{tpu_custom_call.1} parent=1 // pred_fallthru
      _
    // Predicated region
    $region30: #{tpu_custom_call.1} parent=1 // pred_check
      _
    $region31: #{tpu_custom_call.1} parent=1 // pred_check_branch
      %74 = sbr.rel (0) target = $region33
    $region32: #{tpu_custom_call.1} parent=1 // pred_region
      %75 = dma.done [#allocation6], 256
    $region33: #{tpu_custom_call.1} parent=1 // pred_fallthru
      _
    // Predicated region
    $region34: #{tpu_custom_call.1} parent=1 // pred_check
      _
    $region35: #{tpu_custom_call.1} parent=1 // pred_check_branch
      %77 = sbr.rel (0) target = $region37
    $region36: #{tpu_custom_call.1} parent=1 // pred_region
      %78 = dma.done [#allocation9], 256
    $region37: #{tpu_custom_call.1} parent=1 // pred_fallthru
      _
    %v81 = vld [vmem:[#allocation2] sm:$0xff]
    %v82 = vld [vmem:[#allocation2 + $0x8] sm:$0xff]
    %v83 = vmul.f32 %v81, 0.17677669
    %v84 = vmul.f32 %v82, 0.17677669
    %v85 = vld [vmem:[#allocation5] sm:$0xff]
    %v86 = vld [vmem:[#allocation5 + $0x8] sm:$0xff]
    %vm87 = vcmask 261120
    %v89 = vsel %vm87, %v83, 0
    %v92 = vsel %vm87, %v85, 0
    %94 = vmatprep.subr.mxu0 0.0
    %95 = vmatpush1.xpose.msra.mxu0 %v92
    %96 = vmatprep.subr.mxu0 0.0
    %97 = vmatpush1.xpose.msra.mxu0 0.0
    %98 = vmatprep.subr.mxu0 0.0
    %99 = vmatpush1.xpose.msra.mxu0 0.0
    %100 = vmatprep.subr.mxu0 0.0
    %101 = vmatpush1.xpose.msra.mxu0 0.0
    %102 = vmatprep.subr.mxu0 0.0
    %103 = vmatpush1.xpose.msra.mxu0 0.0
    %104 = vmatprep.subr.mxu0 0.0
    %105 = vmatpush1.xpose.msra.mxu0 0.0
    %106 = vmatprep.subr.mxu0 0.0
    %107 = vmatpush1.xpose.msra.mxu0 0.0
    %108 = vmatprep.subr.mxu0 0.0
    %109 = vmatpush1.xpose.msra.mxu0 0.0
    %110 = vmatprep.subr.mxu0 0.0
    %111 = vmatpush1.xpose.msra.mxu0 0.0
    %112 = vmatprep.subr.mxu0 0.0
    %113 = vmatpush1.xpose.msra.mxu0 0.0
    %114 = vmatprep.subr.mxu0 0.0
    %115 = vmatpush1.xpose.msra.mxu0 0.0
    %116 = vmatprep.subr.mxu0 0.0
    %117 = vmatpush1.xpose.msra.mxu0 0.0
    %118 = vmatprep.subr.mxu0 0.0
    %119 = vmatpush1.xpose.msra.mxu0 0.0
    %120 = vmatprep.subr.mxu0 0.0
    %121 = vmatpush1.xpose.msra.mxu0 0.0
    %122 = vmatprep.subr.mxu0 0.0
    %123 = vmatpush1.xpose.msra.mxu0 0.0
    %124 = vmatprep.subr.mxu0 0.0
    %125 = vmatpush1.xpose.msra.mxu0 0.0
    %126 = vmatprep.subr.mxu0 0.0
    %127 = vmatpush1.xpose.msra.mxu0 0.0
    %128 = vmatprep.subr.mxu0 0.0
    %129 = vmatpush1.xpose.msra.mxu0 0.0
    %130 = vmatprep.subr.mxu0 0.0
    %131 = vmatpush1.xpose.msra.mxu0 0.0
    %132 = vmatprep.subr.mxu0 0.0
    %133 = vmatpush1.xpose.msra.mxu0 0.0
    %134 = vmatprep.subr.mxu0 0.0
    %135 = vmatpush1.xpose.msra.mxu0 0.0
    %136 = vmatprep.subr.mxu0 0.0
    %137 = vmatpush1.xpose.msra.mxu0 0.0
    %138 = vmatprep.subr.mxu0 0.0
    %139 = vmatpush1.xpose.msra.mxu0 0.0
    %140 = vmatprep.subr.mxu0 0.0
    %141 = vmatpush1.xpose.msra.mxu0 0.0
    %142 = vmatprep.subr.mxu0 0.0
    %143 = vmatpush1.xpose.msra.mxu0 0.0
    %144 = vmatprep.subr.mxu0 0.0
    %145 = vmatpush1.xpose.msra.mxu0 0.0
    %146 = vmatprep.subr.mxu0 0.0
    %147 = vmatpush1.xpose.msra.mxu0 0.0
    %148 = vmatprep.subr.mxu0 0.0
    %149 = vmatpush1.xpose.msra.mxu0 0.0
    %150 = vmatprep.subr.mxu0 0.0
    %151 = vmatpush1.xpose.msra.mxu0 0.0
    %152 = vmatprep.subr.mxu0 0.0
    %153 = vmatpush1.xpose.msra.mxu0 0.0
    %154 = vmatprep.subr.mxu0 0.0
    %155 = vmatpush1.xpose.msra.mxu0 0.0
    %156 = vmatprep.subr.mxu0 0.0
    %157 = vmatpush1.xpose.msra.mxu0 0.0
    %158 = vmatprep.mubr.f32.mxu0 0.0
    %159 = vmatmul.mubr.f32.gmra.mrb[0].mxu0 %v89
    %v160 = vpop.f32.mrb[0].mxu0
    %v161 = vadd.f32 0.0, %v160
    %v162 = vpop.f32.mrb[0].mxu0
    %163 = vdwg.mxu0
    %v165 = vsel %vm87, %v84, 0
    %v168 = vsel %vm87, %v86, 0
    %170 = vmatprep.subr.mxu0 0.0
    %171 = vmatpush1.xpose.msra.mxu0 %v168
    %172 = vmatprep.subr.mxu0 0.0
    %173 = vmatpush1.xpose.msra.mxu0 0.0
    %174 = vmatprep.subr.mxu0 0.0
    %175 = vmatpush1.xpose.msra.mxu0 0.0
    %176 = vmatprep.subr.mxu0 0.0
    %177 = vmatpush1.xpose.msra.mxu0 0.0
    %178 = vmatprep.subr.mxu0 0.0
    %179 = vmatpush1.xpose.msra.mxu0 0.0
    %180 = vmatprep.subr.mxu0 0.0
    %181 = vmatpush1.xpose.msra.mxu0 0.0
    %182 = vmatprep.subr.mxu0 0.0
    %183 = vmatpush1.xpose.msra.mxu0 0.0
    %184 = vmatprep.subr.mxu0 0.0
    %185 = vmatpush1.xpose.msra.mxu0 0.0
    %186 = vmatprep.subr.mxu0 0.0
    %187 = vmatpush1.xpose.msra.mxu0 0.0
    %188 = vmatprep.subr.mxu0 0.0
    %189 = vmatpush1.xpose.msra.mxu0 0.0
    %190 = vmatprep.subr.mxu0 0.0
    %191 = vmatpush1.xpose.msra.mxu0 0.0
    %192 = vmatprep.subr.mxu0 0.0
    %193 = vmatpush1.xpose.msra.mxu0 0.0
    %194 = vmatprep.subr.mxu0 0.0
    %195 = vmatpush1.xpose.msra.mxu0 0.0
    %196 = vmatprep.subr.mxu0 0.0
    %197 = vmatpush1.xpose.msra.mxu0 0.0
    %198 = vmatprep.subr.mxu0 0.0
    %199 = vmatpush1.xpose.msra.mxu0 0.0
    %200 = vmatprep.subr.mxu0 0.0
    %201 = vmatpush1.xpose.msra.mxu0 0.0
    %202 = vmatprep.subr.mxu0 0.0
    %203 = vmatpush1.xpose.msra.mxu0 0.0
    %204 = vmatprep.subr.mxu0 0.0
    %205 = vmatpush1.xpose.msra.mxu0 0.0
    %206 = vmatprep.subr.mxu0 0.0
    %207 = vmatpush1.xpose.msra.mxu0 0.0
    %208 = vmatprep.subr.mxu0 0.0
    %209 = vmatpush1.xpose.msra.mxu0 0.0
    %210 = vmatprep.subr.mxu0 0.0
    %211 = vmatpush1.xpose.msra.mxu0 0.0
    %212 = vmatprep.subr.mxu0 0.0
    %213 = vmatpush1.xpose.msra.mxu0 0.0
    %214 = vmatprep.subr.mxu0 0.0
    %215 = vmatpush1.xpose.msra.mxu0 0.0
    %216 = vmatprep.subr.mxu0 0.0
    %217 = vmatpush1.xpose.msra.mxu0 0.0
    %218 = vmatprep.subr.mxu0 0.0
    %219 = vmatpush1.xpose.msra.mxu0 0.0
    %220 = vmatprep.subr.mxu0 0.0
    %221 = vmatpush1.xpose.msra.mxu0 0.0
    %222 = vmatprep.subr.mxu0 0.0
    %223 = vmatpush1.xpose.msra.mxu0 0.0
    %224 = vmatprep.subr.mxu0 0.0
    %225 = vmatpush1.xpose.msra.mxu0 0.0
    %226 = vmatprep.subr.mxu0 0.0
    %227 = vmatpush1.xpose.msra.mxu0 0.0
    %228 = vmatprep.subr.mxu0 0.0
    %229 = vmatpush1.xpose.msra.mxu0 0.0
    %230 = vmatprep.subr.mxu0 0.0
    %231 = vmatpush1.xpose.msra.mxu0 0.0
    %232 = vmatprep.subr.mxu0 0.0
    %233 = vmatpush1.xpose.msra.mxu0 0.0
    %234 = vmatprep.mubr.f32.mxu0 0.0
    %235 = vmatmul.mubr.f32.gmra.mrb[0].mxu0 %v165
    %v236 = vpop.f32.mrb[0].mxu0
    %v237 = vadd.f32 0.0, %v236
    %v238 = vpop.f32.mrb[0].mxu0
    %239 = vdwg.mxu0
    %v240 = vld [vmem:[%s3] sm:$0x3]
    %v241 = vld [vmem:[%s3 + $0x2] sm:$0x3]
    %vm242 = vnez %v240
    %vm243 = vnez %v241
    %v244 = vsel %vm242, 16843009, 0
    %v245 = vsel %vm243, 16843009, 0
    %v246 = vunpack.c.0.s8 %v244
    %v247 = vunpack.c.0.s8 %v245
    %vm248 = vcmp.ne.s32.totalorder %v246, 0
    %vm249 = vcmp.ne.s32.totalorder %v247, 0
    %v250 = vsel %vm248, -10000.0, %v161
    %v251 = vsel %vm249, -10000.0, %v237
    %vm252 = vcmask 64512
    %v253 = vsel %vm252, %v250, -inf
    %254 = vmax.xlane.f32.xlu0 %v253
    %v255 = vpop.xlane.xlu0 %254
    %v256 = vsel %vm252, %v251, -inf
    %257 = vmax.xlane.f32.xlu0 %v256
    %v258 = vpop.xlane.xlu0 %257
    %v259 = vsub.f32 %v250, %v255
    %v260 = vsub.f32 %v251, %v258
    %v261 = vmul.f32 %v259, 1.442695
    %v262 = vpow.pop %v261
    %v263 = vmul.f32 %v260, 1.442695
    %v264 = vpow.pop %v263
    %v265 = vsel %vm252, %v262, 0.0
    %266 = vadd.xlane.f32.xlu0 %v265
    %v267 = vpop.xlane.xlu0 %266
    %v268 = vsel %vm252, %v264, 0.0
    %269 = vadd.xlane.f32.xlu0 %v268
    %v270 = vpop.xlane.xlu0 %269
    %v271 = vrcp.pop %v267
    %v272 = vrcp.pop %v270
    %v273 = vmul.f32 %v262, %v271
    %v274 = vmul.f32 %v264, %v272
    %v275 = vld [vmem:[#allocation8] sm:$0xff]
    %v276 = vld [vmem:[#allocation8 + $0x8] sm:$0xff]
    %v277 = vmul.f32 %v273, %v275
    %v278 = vmul.f32 %v274, %v276
    %279 = vst.msk [vmem:[#allocation11] sm:$0xff] %vm252, %v277
    %280 = vst.msk [vmem:[#allocation11 + $0x8] sm:$0xff] %vm252, %v278
    %v281 = vld [vmem:[#allocation7] sm:$0xff]
    %v282 = vld [vmem:[#allocation7 + $0x8] sm:$0xff]
    %v284 = vsel %vm252, %v277, 0
    %286 = vmatprep.subr.mxu0 0.0
    %287 = vmatpush1.msra.mxu0 %v281
    %288 = vmatprep.subr.mxu0 0.0
    %289 = vmatpush1.msra.mxu0 0.0
    %290 = vmatprep.subr.mxu0 0.0
    %291 = vmatpush1.msra.mxu0 0.0
    %292 = vmatprep.subr.mxu0 0.0
    %293 = vmatpush1.msra.mxu0 0.0
    %294 = vmatprep.subr.mxu0 0.0
    %295 = vmatpush1.msra.mxu0 0.0
    %296 = vmatprep.subr.mxu0 0.0
    %297 = vmatpush1.msra.mxu0 0.0
    %298 = vmatprep.subr.mxu0 0.0
    %299 = vmatpush1.msra.mxu0 0.0
    %300 = vmatprep.subr.mxu0 0.0
    %301 = vmatpush1.msra.mxu0 0.0
    %302 = vmatprep.subr.mxu0 0.0
    %303 = vmatpush1.msra.mxu0 0.0
    %304 = vmatprep.subr.mxu0 0.0
    %305 = vmatpush1.msra.mxu0 0.0
    %306 = vmatprep.subr.mxu0 0.0
    %307 = vmatpush1.msra.mxu0 0.0
    %308 = vmatprep.subr.mxu0 0.0
    %309 = vmatpush1.msra.mxu0 0.0
    %310 = vmatprep.subr.mxu0 0.0
    %311 = vmatpush1.msra.mxu0 0.0
    %312 = vmatprep.subr.mxu0 0.0
    %313 = vmatpush1.msra.mxu0 0.0
    %314 = vmatprep.subr.mxu0 0.0
    %315 = vmatpush1.msra.mxu0 0.0
    %316 = vmatprep.subr.mxu0 0.0
    %317 = vmatpush1.msra.mxu0 0.0
    %318 = vmatprep.subr.mxu0 0.0
    %319 = vmatpush1.msra.mxu0 0.0
    %320 = vmatprep.subr.mxu0 0.0
    %321 = vmatpush1.msra.mxu0 0.0
    %322 = vmatprep.subr.mxu0 0.0
    %323 = vmatpush1.msra.mxu0 0.0
    %324 = vmatprep.subr.mxu0 0.0
    %325 = vmatpush1.msra.mxu0 0.0
    %326 = vmatprep.subr.mxu0 0.0
    %327 = vmatpush1.msra.mxu0 0.0
    %328 = vmatprep.subr.mxu0 0.0
    %329 = vmatpush1.msra.mxu0 0.0
    %330 = vmatprep.subr.mxu0 0.0
    %331 = vmatpush1.msra.mxu0 0.0
    %332 = vmatprep.subr.mxu0 0.0
    %333 = vmatpush1.msra.mxu0 0.0
    %334 = vmatprep.subr.mxu0 0.0
    %335 = vmatpush1.msra.mxu0 0.0
    %336 = vmatprep.subr.mxu0 0.0
    %337 = vmatpush1.msra.mxu0 0.0
    %338 = vmatprep.subr.mxu0 0.0
    %339 = vmatpush1.msra.mxu0 0.0
    %340 = vmatprep.subr.mxu0 0.0
    %341 = vmatpush1.msra.mxu0 0.0
    %342 = vmatprep.subr.mxu0 0.0
    %343 = vmatpush1.msra.mxu0 0.0
    %344 = vmatprep.subr.mxu0 0.0
    %345 = vmatpush1.msra.mxu0 0.0
    %346 = vmatprep.subr.mxu0 0.0
    %347 = vmatpush1.msra.mxu0 0.0
    %348 = vmatprep.subr.mxu0 0.0
    %349 = vmatpush1.msra.mxu0 0.0
    %350 = vmatprep.mubr.f32.mxu0 0.0
    %351 = vmatmul.mubr.f32.gmra.mrb[0].mxu0 %v284
    %v352 = vpop.f32.mrb[0].mxu0
    %v353 = vadd.f32 0.0, %v352
    %v354 = vpop.f32.mrb[0].mxu0
    %355 = vdwg.mxu0
    %v357 = vsel %vm252, %v278, 0
    %359 = vmatprep.subr.mxu0 0.0
    %360 = vmatpush1.msra.mxu0 %v282
    %361 = vmatprep.subr.mxu0 0.0
    %362 = vmatpush1.msra.mxu0 0.0
    %363 = vmatprep.subr.mxu0 0.0
    %364 = vmatpush1.msra.mxu0 0.0
    %365 = vmatprep.subr.mxu0 0.0
    %366 = vmatpush1.msra.mxu0 0.0
    %367 = vmatprep.subr.mxu0 0.0
    %368 = vmatpush1.msra.mxu0 0.0
    %369 = vmatprep.subr.mxu0 0.0
    %370 = vmatpush1.msra.mxu0 0.0
    %371 = vmatprep.subr.mxu0 0.0
    %372 = vmatpush1.msra.mxu0 0.0
    %373 = vmatprep.subr.mxu0 0.0
    %374 = vmatpush1.msra.mxu0 0.0
    %375 = vmatprep.subr.mxu0 0.0
    %376 = vmatpush1.msra.mxu0 0.0
    %377 = vmatprep.subr.mxu0 0.0
    %378 = vmatpush1.msra.mxu0 0.0
    %379 = vmatprep.subr.mxu0 0.0
    %380 = vmatpush1.msra.mxu0 0.0
    %381 = vmatprep.subr.mxu0 0.0
    %382 = vmatpush1.msra.mxu0 0.0
    %383 = vmatprep.subr.mxu0 0.0
    %384 = vmatpush1.msra.mxu0 0.0
    %385 = vmatprep.subr.mxu0 0.0
    %386 = vmatpush1.msra.mxu0 0.0
    %387 = vmatprep.subr.mxu0 0.0
    %388 = vmatpush1.msra.mxu0 0.0
    %389 = vmatprep.subr.mxu0 0.0
    %390 = vmatpush1.msra.mxu0 0.0
    %391 = vmatprep.subr.mxu0 0.0
    %392 = vmatpush1.msra.mxu0 0.0
    %393 = vmatprep.subr.mxu0 0.0
    %394 = vmatpush1.msra.mxu0 0.0
    %395 = vmatprep.subr.mxu0 0.0
    %396 = vmatpush1.msra.mxu0 0.0
    %397 = vmatprep.subr.mxu0 0.0
    %398 = vmatpush1.msra.mxu0 0.0
    %399 = vmatprep.subr.mxu0 0.0
    %400 = vmatpush1.msra.mxu0 0.0
    %401 = vmatprep.subr.mxu0 0.0
    %402 = vmatpush1.msra.mxu0 0.0
    %403 = vmatprep.subr.mxu0 0.0
    %404 = vmatpush1.msra.mxu0 0.0
    %405 = vmatprep.subr.mxu0 0.0
    %406 = vmatpush1.msra.mxu0 0.0
    %407 = vmatprep.subr.mxu0 0.0
    %408 = vmatpush1.msra.mxu0 0.0
    %409 = vmatprep.subr.mxu0 0.0
    %410 = vmatpush1.msra.mxu0 0.0
    %411 = vmatprep.subr.mxu0 0.0
    %412 = vmatpush1.msra.mxu0 0.0
    %413 = vmatprep.subr.mxu0 0.0
    %414 = vmatpush1.msra.mxu0 0.0
    %415 = vmatprep.subr.mxu0 0.0
    %416 = vmatpush1.msra.mxu0 0.0
    %417 = vmatprep.subr.mxu0 0.0
    %418 = vmatpush1.msra.mxu0 0.0
    %419 = vmatprep.subr.mxu0 0.0
    %420 = vmatpush1.msra.mxu0 0.0
    %421 = vmatprep.subr.mxu0 0.0
    %422 = vmatpush1.msra.mxu0 0.0
    %423 = vmatprep.mubr.f32.mxu0 0.0
    %424 = vmatmul.mubr.f32.gmra.mrb[0].mxu0 %v357
    %v425 = vpop.f32.mrb[0].mxu0
    %v426 = vadd.f32 0.0, %v425
    %v427 = vpop.f32.mrb[0].mxu0
    %428 = vdwg.mxu0
    %429 = vst.msk [vmem:[#allocation10] sm:$0xff] %vm87, %v353
    %430 = vst.msk [vmem:[#allocation10 + $0x8] sm:$0xff] %vm87, %v426
    // Predicated region
    $region38: #{tpu_custom_call.1} parent=1 // pred_check
      _
    $region39: #{tpu_custom_call.1} parent=1 // pred_check_branch
      %432 = sbr.rel (0) target = $region41
    $region40: #{tpu_custom_call.1} parent=1 // pred_region
      %s434 = ssub.s32 256, 256
      %435 = vsyncadd [#allocation4], %s434
      %s436 = sshll.u32 [#allocation10], 4
      %s437 = int_to_ptr.vmem [resolvable:$true] %s436
      %442 = dma.vmem_to_hbm [thread:$0]  %s437, 256, %s5, [#allocation4], 128, 128, 8
    $region41: #{tpu_custom_call.1} parent=1 // pred_fallthru
      _
    // Predicated region
    $region42: #{tpu_custom_call.1} parent=1 // pred_check
      _
    $region43: #{tpu_custom_call.1} parent=1 // pred_check_branch
      %444 = sbr.rel (0) target = $region45
    $region44: #{tpu_custom_call.1} parent=1 // pred_region
      %s446 = ssub.s32 256, 256
      %447 = vsyncadd [#allocation12], %s446
      %s448 = sshll.u32 [#allocation11], 4
      %s449 = int_to_ptr.vmem [resolvable:$true] %s448
      %454 = dma.vmem_to_hbm [thread:$0]  %s449, 256, %s6, [#allocation12], 128, 128, 8
    $region45: #{tpu_custom_call.1} parent=1 // pred_fallthru
      _
    // Predicated region
    $region46: #{tpu_custom_call.1} parent=1 // pred_check
      _
    $region47: #{tpu_custom_call.1} parent=1 // pred_check_branch
      %456 = sbr.rel (0) target = $region49
    $region48: #{tpu_custom_call.1} parent=1 // pred_region
      %457 = dma.done [#allocation4], 256
    $region49: #{tpu_custom_call.1} parent=1 // pred_fallthru
      _
    // Predicated region
    $region50: #{tpu_custom_call.1} parent=1 // pred_check
      _
    $region51: #{tpu_custom_call.1} parent=1 // pred_check_branch
      %459 = sbr.rel (0) target = $region53
    $region52: #{tpu_custom_call.1} parent=1 // pred_region
      %460 = dma.done [#allocation12], 256
    $region53: #{tpu_custom_call.1} parent=1 // pred_fallthru
      _
    %461 = vsyncpa [#allocation3], 1
    %462 = vsyncpa [#allocation6], 1
    %463 = vsyncpa [#allocation9], 1
    %464 = vsyncpa [#allocation4], 1
    %465 = vsyncpa [#allocation12], 1

</llo_original>
